<compile_context>
chip_gen: v7x
topology: tpu7x:2x2x1
jax: 0.10.0
libtpu: 0.0.40
codegen_flags: <defaults>
</compile_context>

<pallas_src>
import functools

import jax
import jax.numpy as jnp
from jax.experimental import pallas as pl
from jax.experimental.pallas import tpu as pltpu


# ----------------------------- Pallas kernel ------------------------------- #

def _make_fused_gin_kernel(n_layers):
    """Fused n_layers GIN stack + channel-sum readout, single kernel invocation.

    Operands (all full-array blocks, lane-dense 2-D layouts):
      eps_ref : SMEM [n_layers]            f32
      a_ref   : VMEM [N, N]                bf16  dense adjacency (#edges j->i)
      x_ref   : VMEM [N, K*M]              f32   node features, channels in lanes
      per layer l (4 refs):
        w1b_l : VMEM [K*Din_l, K*H]        bf16  kron(I_K, W1_l)
        b1t_l : VMEM [1, K*H]              f32   tile(b1_l, K)
        w2b_l : VMEM [K*H, K*Dout_l]       bf16  kron(I_K, W2_l)
                (last layer: [K*H, Dout] = kron(ones(K,1), W2) -> folds PE.sum(dim=1))
        b2t_l : VMEM [1, K*Dout_l]         f32   (last layer: [1, Dout] = K*b2)
      o_ref   : VMEM [N, Dout]             f32
    """
    def kernel(eps_ref, a_ref, x_ref, *refs):
        w_refs = refs[:4 * n_layers]
        o_ref = refs[4 * n_layers]

        A = a_ref[...]                                   # bf16 [N, N], loaded once
        X = x_ref[...].astype(jnp.float32)               # f32  [N, K*D]

        for li in range(n_layers):                       # static unroll (shapes differ)
            w1b = w_refs[4 * li + 0][...]
            b1t = w_refs[4 * li + 1][...]
            w2b = w_refs[4 * li + 2][...]
            b2t = w_refs[4 * li + 3][...]
            eps = eps_ref[li]                            # scalar from SMEM

            # Neighborhood sum-aggregation for all K channels in one MXU matmul.
            S = jnp.dot(A, X.astype(jnp.bfloat16),
                        preferred_element_type=jnp.float32)
            Z = (1.0 + eps) * X + S

            # Per-channel 2-layer MLP via block-diagonal weights (lane-dense).
            H1 = jnp.dot(Z.astype(jnp.bfloat16), w1b,
                         preferred_element_type=jnp.float32) + b1t
            H1 = jnp.maximum(H1, 0.0)
            X = jnp.dot(H1.astype(jnp.bfloat16), w2b,
                        preferred_element_type=jnp.float32) + b2t

        # Last layer's w2b/b2t already fold in the PE.sum(dim=1) reduction.
        o_ref[...] = X.astype(o_ref.dtype)

    return kernel


def gine_phi_pallas(A_bf16, X0, eps_vec, flat_weights, out_dims):
    """A_bf16: [N,N] bf16; X0: [N, K*M] f32; eps_vec: [L] f32; flat_weights: 4*L arrays."""
    N = X0.shape[0]
    n_layers = eps_vec.shape[0]
    kernel = _make_fused_gin_kernel(n_layers)

    in_specs = (
        [pl.BlockSpec(memory_space=pltpu.MemorySpace.SMEM)]                    # eps
        + [pl.BlockSpec(memory_space=pltpu.MemorySpace.VMEM)] * (2 + 4 * n_layers)
    )
    return pl.pallas_call(
        kernel,
        out_shape=jax.ShapeDtypeStruct((N, out_dims), jnp.float32),
        in_specs=in_specs,
        out_specs=pl.BlockSpec(memory_space=pltpu.MemorySpace.VMEM),
    )(eps_vec, A_bf16, X0, *flat_weights)


# ------------------------------ GINEPhi glue -------------------------------- #

def pad_and_concat(W_list):
    n_max = max(W.shape[0] for W in W_list)
    padded = []
    for W in W_list:
        zeros = jnp.zeros((W.shape[0], n_max - W.shape[1], W.shape[2]), W.dtype)
        padded.append(jnp.concatenate([W, zeros], axis=1))
    return jnp.concatenate(padded, axis=0)               # [N_sum, n_max, M]


def dense_adjacency(edge_index, n_nodes):
    src, dst = edge_index[0], edge_index[1]
    # A[i, j] = #edges j -> i   (PyG source_to_target sum aggregation)
    return jnp.zeros((n_nodes, n_nodes), jnp.float32).at[dst, src].add(1.0)


def _build_fused_params(params, K):
    """Fold the channel axis K into the layer weights (block-diagonal form)."""
    n_layers = len(params)
    eps_vec = jnp.concatenate([p["eps"].reshape(1) for p in params]).astype(jnp.float32)
    I_K = jnp.eye(K, dtype=jnp.float32)
    sum_K = jnp.ones((K, 1), jnp.float32)
    flat = []
    for li, p in enumerate(params):
        flat.append(jnp.kron(I_K, p["W1"]).astype(jnp.bfloat16))        # [K*Din, K*H]
        flat.append(jnp.tile(p["b1"], (1, K)).astype(jnp.float32))      # [1, K*H]
        if li < n_layers - 1:
            flat.append(jnp.kron(I_K, p["W2"]).astype(jnp.bfloat16))    # [K*H, K*Dout]
            flat.append(jnp.tile(p["b2"], (1, K)).astype(jnp.float32))  # [1, K*Dout]
        else:
            # Fold PE.sum(dim=1): sum_k (h_k @ W2 + b2) = h @ kron(1_K, W2) + K*b2
            flat.append(jnp.kron(sum_K, p["W2"]).astype(jnp.bfloat16))  # [K*H, Dout]
            flat.append((K * p["b2"]).astype(jnp.float32))              # [1, Dout]
    return eps_vec, flat


@functools.partial(jax.jit, static_argnames=("out_dims",))
def gine_phi_forward(W, A, params, out_dims):
    # W: [N_sum, n_max, M] already padded/concatenated; A: [N_sum, N_sum] dense adj.
    N, K, M = W.shape
    X0 = W.reshape(N, K * M).astype(jnp.float32)          # lane-dense [N, K*M]
    A_bf16 = A.astype(jnp.bfloat16)                       # exact: small integer counts
    eps_vec, flat = _build_fused_params(params, K)
    return gine_phi_pallas(A_bf16, X0, eps_vec, flat, out_dims)   # [N_sum, out_dims]


def gine_phi_reference(W, A, params):
    """Pure-JAX f32 reference mirroring the PyTorch forward (for validation)."""
    X = W.astype(jnp.float32)                             # [N, K, M]
    for p in params:
        S = jnp.einsum("nu,ukd->nkd", A, X)
        Z = (1.0 + p["eps"][0, 0]) * X + S
        h = jnp.maximum(jnp.einsum("nkd,dh->nkh", Z, p["W1"]) + p["b1"][0], 0.0)
        X = jnp.einsum("nkh,ho->nko", h, p["W2"]) + p["b2"][0]
    return X.sum(axis=1)                                   # PE.sum(dim=1)


def init_params(key, n_layers, in_dims, hidden_dims, out_dims):
    params = []
    d_in = in_dims
    for li in range(n_layers):
        d_out = hidden_dims if li < n_layers - 1 else out_dims
        key, k1, k2, k3 = jax.random.split(key, 4)
        params.append({
            "eps": jnp.zeros((1, 1), jnp.float32) + 0.1 * (li + 1),
            "W1": 0.1 * jax.random.normal(k1, (d_in, hidden_dims), jnp.float32),
            "b1": 0.05 * jax.random.normal(k2, (1, hidden_dims), jnp.float32),
            "W2": 0.1 * jax.random.normal(k3, (hidden_dims, d_out), jnp.float32),
            "b2": jnp.zeros((1, d_out), jnp.float32),
        })
        d_in = hidden_dims
    return params


# ---------------------------------- main ------------------------------------ #

if __name__ == "__main__":
    key = jax.random.PRNGKey(0)

    # Two small graphs: 5 nodes and 3 nodes, M = 4 spectral channels.
    n_layers, in_dims, hidden_dims, out_dims = 2, 4, 16, 8
    sizes = [5, 3]
    W_list = []
    for n in sizes:
        key, k = jax.random.split(key)
        W_list.append(jax.random.normal(k, (n, n, in_dims), jnp.float32))

    # Batched COO edge_index (ring in each graph, both directions), offsets applied.
    e1 = [(0, 1), (1, 2), (2, 3), (3, 4), (4, 0)]
    e2 = [(5, 6), (6, 7), (7, 5)]
    edges = e1 + [(b, a) for a, b in e1] + e2 + [(b, a) for a, b in e2]
    edge_index = jnp.array(edges, dtype=jnp.int32).T       # [2, E_sum]

    params = init_params(jax.random.PRNGKey(0), n_layers, in_dims, hidden_dims, out_dims)

    W = pad_and_concat(W_list)                              # [N_sum=8, n_max=5, M=4]
    A = dense_adjacency(edge_index, W.shape[0])             # [8, 8]

    out = gine_phi_forward(W, A, params, out_dims)
    out = jax.block_until_ready(out)                        # [N_sum, out_dims] = [8, 8]

    ref = gine_phi_reference(W, A, params)
    assert out.shape == (W.shape[0], out_dims), out.shape
    # bf16 MXU operands (f32 accumulation) -> slightly relaxed tolerance vs f32 ref.
    assert jnp.allclose(out, ref, atol=5e-2, rtol=5e-2), (
        f"max abs err = {jnp.max(jnp.abs(out - ref))}")

    print("KERNEL_OK")
</pallas_src>

<mosaic_0001>
module attributes {stable_mosaic.version = 11 : i64} {
  func.func @kernel(%arg0: memref<2xf32, #tpu.memory_space<smem>>, %arg1: memref<8x8xbf16, #tpu.memory_space<vmem>>, %arg2: memref<8x20xf32, #tpu.memory_space<vmem>>, %arg3: memref<20x80xbf16, #tpu.memory_space<vmem>>, %arg4: memref<1x80xf32, #tpu.memory_space<vmem>>, %arg5: memref<80x80xbf16, #tpu.memory_space<vmem>>, %arg6: memref<1x80xf32, #tpu.memory_space<vmem>>, %arg7: memref<80x80xbf16, #tpu.memory_space<vmem>>, %arg8: memref<1x80xf32, #tpu.memory_space<vmem>>, %arg9: memref<80x8xbf16, #tpu.memory_space<vmem>>, %arg10: memref<1x8xf32, #tpu.memory_space<vmem>>, %arg11: memref<8x8xf32, #tpu.memory_space<vmem>>) attributes {dimension_semantics = [], scalar_prefetch = 0 : i64, scratch_operands = 0 : i64, tpu.core_type = #tpu.core_type<tc>} {
    %c0 = arith.constant 0 : index
    %c0_0 = arith.constant 0 : index
    %0 = vector.load %arg1[%c0, %c0_0] : memref<8x8xbf16, #tpu.memory_space<vmem>>, vector<8x8xbf16>
    %c0_1 = arith.constant 0 : index
    %c0_2 = arith.constant 0 : index
    %1 = vector.load %arg2[%c0_1, %c0_2] : memref<8x20xf32, #tpu.memory_space<vmem>>, vector<8x20xf32>
    %c0_3 = arith.constant 0 : index
    %c0_4 = arith.constant 0 : index
    %2 = vector.load %arg3[%c0_3, %c0_4] : memref<20x80xbf16, #tpu.memory_space<vmem>>, vector<20x80xbf16>
    %c0_5 = arith.constant 0 : index
    %c0_6 = arith.constant 0 : index
    %3 = vector.load %arg4[%c0_5, %c0_6] : memref<1x80xf32, #tpu.memory_space<vmem>>, vector<1x80xf32>
    %c0_7 = arith.constant 0 : index
    %c0_8 = arith.constant 0 : index
    %4 = vector.load %arg5[%c0_7, %c0_8] : memref<80x80xbf16, #tpu.memory_space<vmem>>, vector<80x80xbf16>
    %c0_9 = arith.constant 0 : index
    %c0_10 = arith.constant 0 : index
    %5 = vector.load %arg6[%c0_9, %c0_10] : memref<1x80xf32, #tpu.memory_space<vmem>>, vector<1x80xf32>
    %c0_11 = arith.constant 0 : index
    %6 = memref.load %arg0[%c0_11] : memref<2xf32, #tpu.memory_space<smem>>
    %7 = arith.truncf %1 : vector<8x20xf32> to vector<8x20xbf16>
    %cst = arith.constant dense<0.000000e+00> : vector<8x20xf32>
    %8 = tpu.matmul %0, %7, %cst {dimension_numbers = #tpu.dot_dimension_numbers<[1], [0], [0], [1], [0, 0, 1, 1], [], []>} : vector<8x8xbf16>, vector<8x20xbf16>, vector<8x20xf32> -> vector<8x20xf32>
    %cst_12 = arith.constant 1.000000e+00 : f32
    %9 = arith.addf %cst_12, %6 : f32
    %10 = vector.broadcast %9 : f32 to vector<8x20xf32>
    %11 = arith.mulf %10, %1 : vector<8x20xf32>
    %12 = arith.addf %11, %8 : vector<8x20xf32>
    %13 = arith.truncf %12 : vector<8x20xf32> to vector<8x20xbf16>
    %cst_13 = arith.constant dense<0.000000e+00> : vector<8x80xf32>
    %14 = tpu.matmul %13, %2, %cst_13 {dimension_numbers = #tpu.dot_dimension_numbers<[1], [0], [0], [1], [0, 0, 1, 1], [], []>} : vector<8x20xbf16>, vector<20x80xbf16>, vector<8x80xf32> -> vector<8x80xf32>
    %15 = vector.broadcast %3 : vector<1x80xf32> to vector<8x80xf32>
    %16 = arith.addf %14, %15 : vector<8x80xf32>
    %cst_14 = arith.constant 0.000000e+00 : f32
    %17 = vector.broadcast %cst_14 : f32 to vector<8x80xf32>
    %18 = arith.maximumf %16, %17 : vector<8x80xf32>
    %19 = arith.truncf %18 : vector<8x80xf32> to vector<8x80xbf16>
    %cst_15 = arith.constant dense<0.000000e+00> : vector<8x80xf32>
    %20 = tpu.matmul %19, %4, %cst_15 {dimension_numbers = #tpu.dot_dimension_numbers<[1], [0], [0], [1], [0, 0, 1, 1], [], []>} : vector<8x80xbf16>, vector<80x80xbf16>, vector<8x80xf32> -> vector<8x80xf32>
    %21 = vector.broadcast %5 : vector<1x80xf32> to vector<8x80xf32>
    %22 = arith.addf %20, %21 : vector<8x80xf32>
    %c0_16 = arith.constant 0 : index
    %c0_17 = arith.constant 0 : index
    %23 = vector.load %arg7[%c0_16, %c0_17] : memref<80x80xbf16, #tpu.memory_space<vmem>>, vector<80x80xbf16>
    %c0_18 = arith.constant 0 : index
    %c0_19 = arith.constant 0 : index
    %24 = vector.load %arg8[%c0_18, %c0_19] : memref<1x80xf32, #tpu.memory_space<vmem>>, vector<1x80xf32>
    %c0_20 = arith.constant 0 : index
    %c0_21 = arith.constant 0 : index
    %25 = vector.load %arg9[%c0_20, %c0_21] : memref<80x8xbf16, #tpu.memory_space<vmem>>, vector<80x8xbf16>
    %c0_22 = arith.constant 0 : index
    %c0_23 = arith.constant 0 : index
    %26 = vector.load %arg10[%c0_22, %c0_23] : memref<1x8xf32, #tpu.memory_space<vmem>>, vector<1x8xf32>
    %c1 = arith.constant 1 : index
    %27 = memref.load %arg0[%c1] : memref<2xf32, #tpu.memory_space<smem>>
    %28 = arith.truncf %22 : vector<8x80xf32> to vector<8x80xbf16>
    %cst_24 = arith.constant dense<0.000000e+00> : vector<8x80xf32>
    %29 = tpu.matmul %0, %28, %cst_24 {dimension_numbers = #tpu.dot_dimension_numbers<[1], [0], [0], [1], [0, 0, 1, 1], [], []>} : vector<8x8xbf16>, vector<8x80xbf16>, vector<8x80xf32> -> vector<8x80xf32>
    %cst_25 = arith.constant 1.000000e+00 : f32
    %30 = arith.addf %cst_25, %27 : f32
    %31 = vector.broadcast %30 : f32 to vector<8x80xf32>
    %32 = arith.mulf %31, %22 : vector<8x80xf32>
    %33 = arith.addf %32, %29 : vector<8x80xf32>
    %34 = arith.truncf %33 : vector<8x80xf32> to vector<8x80xbf16>
    %cst_26 = arith.constant dense<0.000000e+00> : vector<8x80xf32>
    %35 = tpu.matmul %34, %23, %cst_26 {dimension_numbers = #tpu.dot_dimension_numbers<[1], [0], [0], [1], [0, 0, 1, 1], [], []>} : vector<8x80xbf16>, vector<80x80xbf16>, vector<8x80xf32> -> vector<8x80xf32>
    %36 = vector.broadcast %24 : vector<1x80xf32> to vector<8x80xf32>
    %37 = arith.addf %35, %36 : vector<8x80xf32>
    %cst_27 = arith.constant 0.000000e+00 : f32
    %38 = vector.broadcast %cst_27 : f32 to vector<8x80xf32>
    %39 = arith.maximumf %37, %38 : vector<8x80xf32>
    %40 = arith.truncf %39 : vector<8x80xf32> to vector<8x80xbf16>
    %cst_28 = arith.constant dense<0.000000e+00> : vector<8x8xf32>
    %41 = tpu.matmul %40, %25, %cst_28 {dimension_numbers = #tpu.dot_dimension_numbers<[1], [0], [0], [1], [0, 0, 1, 1], [], []>} : vector<8x80xbf16>, vector<80x8xbf16>, vector<8x8xf32> -> vector<8x8xf32>
    %42 = vector.broadcast %26 : vector<1x8xf32> to vector<8x8xf32>
    %43 = arith.addf %41, %42 : vector<8x8xf32>
    %c0_29 = arith.constant 0 : index
    %c0_30 = arith.constant 0 : index
    %44 = vector.load %arg11[%c0_29, %c0_30] : memref<8x8xf32, #tpu.memory_space<vmem>>, vector<8x8xf32>
    tpu.vector_store %arg11[%c0_29, %c0_30], %43 {strides = array<i32>} : memref<8x8xf32, #tpu.memory_space<vmem>>, vector<8x8xf32>,
    return
  }
}

</mosaic_0001>

<llo_original>
// kernel: gine_phi_forward.1
$region0: #{gine_phi_forward.1}
  #allocation0 [shape = 'u32[]', space=smem, size = 0x4, offset = 0x4, fixed_abs, tag = 'smem constant byte address 0x4 - core index']
  #allocation1 [shape = 'u32[144,128]{1,0:T(1,128)}', space=vmem, size = 0x12000, scoped, tag = 'internal scratch']
  %s0 = inlined_call_operand.vmem [shape: f32[2], index: 0, kind: input, shape index: {}]
  %s1 = inlined_call_operand.vmem [shape: bf16[8,8], index: 1, kind: input, shape index: {}]
  %s2 = inlined_call_operand.vmem [shape: f32[8,20], index: 2, kind: input, shape index: {}]
  %s3 = inlined_call_operand.vmem [shape: bf16[20,80], index: 3, kind: input, shape index: {}]
  %s4 = inlined_call_operand.vmem [shape: f32[1,80], index: 4, kind: input, shape index: {}]
  %s5 = inlined_call_operand.vmem [shape: bf16[80,80], index: 5, kind: input, shape index: {}]
  %s6 = inlined_call_operand.vmem [shape: f32[1,80], index: 6, kind: input, shape index: {}]
  %s7 = inlined_call_operand.vmem [shape: bf16[80,80], index: 7, kind: input, shape index: {}]
  %s8 = inlined_call_operand.vmem [shape: f32[1,80], index: 8, kind: input, shape index: {}]
  %s9 = inlined_call_operand.vmem [shape: bf16[80,8], index: 9, kind: input, shape index: {}]
  %s10 = inlined_call_operand.vmem [shape: f32[1,8], index: 10, kind: input, shape index: {}]
  %s11 = inlined_call_operand.hbm [shape: f32[8,8], index: 11, kind: output, shape index: {}]
  %s12 = sld [smem:[#allocation0]]
  $region58: #{gine_phi_forward.1} parent=0
    _
  %s14 = ssub.s32 1, %s12
  %s15 = scalar_select 0, %s14, %s12
  $region1: #{gine_phi_forward.1} parent=0
    #allocation2 [shape = 'u8[512]{0}', space=smem, size = 0x200, scoped, tag = 'input window, operand 0, single buffered']
    #allocation3 [shape = 's32[1]{0}', space=sflag, size = 0x4, scoped, tag = 'scoped memory for gine_phi_forward.1']
    #allocation4 [shape = 's32[1]{0}', space=sflag, size = 0x4, scoped, tag = 'scoped memory for gine_phi_forward.1']
    #allocation5 [shape = 'u8[4096]{0}', space=vmem, size = 0x1000, scoped, tag = 'output window, operand 0, single buffered']
    %16 = vsyncpa [#allocation4], 0
    %17 = vsyncpa [#allocation3], 0
    // Predicated region
    $region2: #{gine_phi_forward.1} parent=1 // pred_check
      _
    $region3: #{gine_phi_forward.1} parent=1 // pred_check_branch
      %19 = sbr.rel (0) target = $region5
    $region4: #{gine_phi_forward.1} parent=1 // pred_region
      %s21 = ssub.s32 16, 16
      %22 = vsyncadd [#allocation4], %s21
      %s24 = sshll.u32 %s0, 4
      %s25 = int_to_ptr.vmem [resolvable:$true] %s24
      %27 = dma.vmem_to_smem %s25, 16, [#allocation2], [#allocation4]
    $region5: #{gine_phi_forward.1} parent=1 // pred_fallthru
      _
    // Predicated region
    $region6: #{gine_phi_forward.1} parent=1 // pred_check
      _
    $region7: #{gine_phi_forward.1} parent=1 // pred_check_branch
      %29 = sbr.rel (0) target = $region9
    $region8: #{gine_phi_forward.1} parent=1 // pred_region
      _
    $region9: #{gine_phi_forward.1} parent=1 // pred_fallthru
      _
    // Predicated region
    $region10: #{gine_phi_forward.1} parent=1 // pred_check
      _
    $region11: #{gine_phi_forward.1} parent=1 // pred_check_branch
      %31 = sbr.rel (0) target = $region13
    $region12: #{gine_phi_forward.1} parent=1 // pred_region
      _
    $region13: #{gine_phi_forward.1} parent=1 // pred_fallthru
      _
    // Predicated region
    $region14: #{gine_phi_forward.1} parent=1 // pred_check
      _
    $region15: #{gine_phi_forward.1} parent=1 // pred_check_branch
      %33 = sbr.rel (0) target = $region17
    $region16: #{gine_phi_forward.1} parent=1 // pred_region
      _
    $region17: #{gine_phi_forward.1} parent=1 // pred_fallthru
      _
    // Predicated region
    $region18: #{gine_phi_forward.1} parent=1 // pred_check
      _
    $region19: #{gine_phi_forward.1} parent=1 // pred_check_branch
      %35 = sbr.rel (0) target = $region21
    $region20: #{gine_phi_forward.1} parent=1 // pred_region
      _
    $region21: #{gine_phi_forward.1} parent=1 // pred_fallthru
      _
    // Predicated region
    $region22: #{gine_phi_forward.1} parent=1 // pred_check
      _
    $region23: #{gine_phi_forward.1} parent=1 // pred_check_branch
      %37 = sbr.rel (0) target = $region25
    $region24: #{gine_phi_forward.1} parent=1 // pred_region
      _
    $region25: #{gine_phi_forward.1} parent=1 // pred_fallthru
      _
    // Predicated region
    $region26: #{gine_phi_forward.1} parent=1 // pred_check
      _
    $region27: #{gine_phi_forward.1} parent=1 // pred_check_branch
      %39 = sbr.rel (0) target = $region29
    $region28: #{gine_phi_forward.1} parent=1 // pred_region
      _
    $region29: #{gine_phi_forward.1} parent=1 // pred_fallthru
      _
    // Predicated region
    $region30: #{gine_phi_forward.1} parent=1 // pred_check
      _
    $region31: #{gine_phi_forward.1} parent=1 // pred_check_branch
      %41 = sbr.rel (0) target = $region33
    $region32: #{gine_phi_forward.1} parent=1 // pred_region
      _
    $region33: #{gine_phi_forward.1} parent=1 // pred_fallthru
      _
    // Predicated region
    $region34: #{gine_phi_forward.1} parent=1 // pred_check
      _
    $region35: #{gine_phi_forward.1} parent=1 // pred_check_branch
      %43 = sbr.rel (0) target = $region37
    $region36: #{gine_phi_forward.1} parent=1 // pred_region
      _
    $region37: #{gine_phi_forward.1} parent=1 // pred_fallthru
      _
    // Predicated region
    $region38: #{gine_phi_forward.1} parent=1 // pred_check
      _
    $region39: #{gine_phi_forward.1} parent=1 // pred_check_branch
      %45 = sbr.rel (0) target = $region41
    $region40: #{gine_phi_forward.1} parent=1 // pred_region
      _
    $region41: #{gine_phi_forward.1} parent=1 // pred_fallthru
      _
    // Predicated region
    $region42: #{gine_phi_forward.1} parent=1 // pred_check
      _
    $region43: #{gine_phi_forward.1} parent=1 // pred_check_branch
      %47 = sbr.rel (0) target = $region45
    $region44: #{gine_phi_forward.1} parent=1 // pred_region
      _
    $region45: #{gine_phi_forward.1} parent=1 // pred_fallthru
      _
    // Predicated region
    $region46: #{gine_phi_forward.1} parent=1 // pred_check
      _
    $region47: #{gine_phi_forward.1} parent=1 // pred_check_branch
      %49 = sbr.rel (0) target = $region49
    $region48: #{gine_phi_forward.1} parent=1 // pred_region
      %50 = dma.done [#allocation4], 16
    $region49: #{gine_phi_forward.1} parent=1 // pred_fallthru
      _
    %51 = sfence
    %v53 = vld [vmem:[%s1] sm:$0xf]
    %v54 = vld [vmem:[%s2] sm:$0xff]
    %v55 = vld [vmem:[%s3] sm:$0xf]
    %v56 = vld [vmem:[%s3 + $0x4] sm:$0xf]
    %v57 = vld [vmem:[%s3 + $0x8] sm:$0x3]
    %v58 = vld [vmem:[%s4] sm:$0x1]
    %v59 = vld [vmem:[%s5] sm:$0xf]
    %v60 = vld [vmem:[%s5 + $0x4] sm:$0xf]
    %v61 = vld [vmem:[%s5 + $0x8] sm:$0xf]
    %v62 = vld [vmem:[%s5 + $0xc] sm:$0xf]
    %v63 = vld [vmem:[%s5 + $0x10] sm:$0xf]
    %v64 = vld [vmem:[%s5 + $0x14] sm:$0xf]
    %v65 = vld [vmem:[%s5 + $0x18] sm:$0xf]
    %v66 = vld [vmem:[%s5 + $0x1c] sm:$0xf]
    %v67 = vld [vmem:[%s5 + $0x20] sm:$0xf]
    %v68 = vld [vmem:[%s5 + $0x24] sm:$0xf]
    %v69 = vld [vmem:[%s6] sm:$0x1]
    %s70 = sld [smem:[#allocation2]]
    %v71 = vpack.c.bf16 %v54, %v54
    %vm72 = vcmask 64512
    %v74 = vsel %vm72, %v53, 0
    %vm76 = vcmask 1043456
    %v78 = vsel %vm76, %v71, 0
    %80 = vmatprep.subr.bf16.mxu0 0
    %81 = vmatpush1.bf16.msra.mxu0 %v78
    %82 = vmatprep.subr.bf16.mxu0 0
    %83 = vmatpush1.bf16.msra.mxu0 0
    %84 = vmatprep.subr.bf16.mxu0 0
    %85 = vmatpush1.bf16.msra.mxu0 0
    %86 = vmatprep.subr.bf16.mxu0 0
    %87 = vmatpush1.bf16.msra.mxu0 0
    %88 = vmatprep.subr.bf16.mxu0 0
    %89 = vmatpush1.bf16.msra.mxu0 0
    %90 = vmatprep.subr.bf16.mxu0 0
    %91 = vmatpush1.bf16.msra.mxu0 0
    %92 = vmatprep.subr.bf16.mxu0 0
    %93 = vmatpush1.bf16.msra.mxu0 0
    %94 = vmatprep.subr.bf16.mxu0 0
    %95 = vmatpush1.bf16.msra.mxu0 0
    %96 = vmatprep.subr.bf16.mxu0 0
    %97 = vmatpush1.bf16.msra.mxu0 0
    %98 = vmatprep.subr.bf16.mxu0 0
    %99 = vmatpush1.bf16.msra.mxu0 0
    %100 = vmatprep.subr.bf16.mxu0 0
    %101 = vmatpush1.bf16.msra.mxu0 0
    %102 = vmatprep.subr.bf16.mxu0 0
    %103 = vmatpush1.bf16.msra.mxu0 0
    %104 = vmatprep.subr.bf16.mxu0 0
    %105 = vmatpush1.bf16.msra.mxu0 0
    %106 = vmatprep.subr.bf16.mxu0 0
    %107 = vmatpush1.bf16.msra.mxu0 0
    %108 = vmatprep.subr.bf16.mxu0 0
    %109 = vmatpush1.bf16.msra.mxu0 0
    %110 = vmatprep.subr.bf16.mxu0 0
    %111 = vmatpush1.bf16.msra.mxu0 0
    %112 = vmatprep.mubr.bf16.mxu0 0
    %113 = vmatmul.mubr.bf16.gmra.mrb[0].mxu0 %v74
    %v114 = vpop.f32.mrb[0].mxu0
    %v115 = vadd.f32 0.0, %v114
    %v116 = vpop.f32.mrb[0].mxu0
    %v117 = vpop.f32.mrb[0].mxu0
    %v118 = vpop.f32.mrb[0].mxu0
    %119 = vdwg.mxu0
    %s120 = sadd.f32 %s70, 1.0
    %v121 = vstv %s120
    %v122 = vmul.f32 %v121, %v54
    %v123 = vadd.f32 %v122, %v115
    %v124 = vpack.c.bf16 %v123, %v123
    %v126 = vlaneseq
    %v127 = vshrl.u32 %v126, 7
    %v128 = vsub.s32 0, %v127
    %v129 = vrot.slane %v58, %v128
    %v134 = vunpack.c.l.b16 %v55
    %v135 = vunpack.c.l.b16 %v56
    %v136 = vunpack.c.l.b16 %v57
    %v137 = vpack.c.b16 %v135, %v134
    %v138 = vpack.c.b16 %v136, %v136
    %vm140 = vcmask 162816
    %v142 = vsel %vm140, %v124, 0
    %vm144 = vcmask 1041408
    %v146 = vsel %vm144, %v138, 0
    %148 = vmatprep.subr.bf16.mxu0 0
    %149 = vmatpush1.bf16.msra.mxu0 %v137
    %150 = vmatprep.subr.bf16.mxu0 0
    %151 = vmatpush1.bf16.msra.mxu0 %v146
    %152 = vmatprep.subr.bf16.mxu0 0
    %153 = vmatpush1.bf16.msra.mxu0 0
    %154 = vmatprep.subr.bf16.mxu0 0
    %155 = vmatpush1.bf16.msra.mxu0 0
    %156 = vmatprep.subr.bf16.mxu0 0
    %157 = vmatpush1.bf16.msra.mxu0 0
    %158 = vmatprep.subr.bf16.mxu0 0
    %159 = vmatpush1.bf16.msra.mxu0 0
    %160 = vmatprep.subr.bf16.mxu0 0
    %161 = vmatpush1.bf16.msra.mxu0 0
    %162 = vmatprep.subr.bf16.mxu0 0
    %163 = vmatpush1.bf16.msra.mxu0 0
    %164 = vmatprep.subr.bf16.mxu0 0
    %165 = vmatpush1.bf16.msra.mxu0 0
    %166 = vmatprep.subr.bf16.mxu0 0
    %167 = vmatpush1.bf16.msra.mxu0 0
    %168 = vmatprep.subr.bf16.mxu0 0
    %169 = vmatpush1.bf16.msra.mxu0 0
    %170 = vmatprep.subr.bf16.mxu0 0
    %171 = vmatpush1.bf16.msra.mxu0 0
    %172 = vmatprep.subr.bf16.mxu0 0
    %173 = vmatpush1.bf16.msra.mxu0 0
    %174 = vmatprep.subr.bf16.mxu0 0
    %175 = vmatpush1.bf16.msra.mxu0 0
    %176 = vmatprep.subr.bf16.mxu0 0
    %177 = vmatpush1.bf16.msra.mxu0 0
    %178 = vmatprep.subr.bf16.mxu0 0
    %179 = vmatpush1.bf16.msra.mxu0 0
    %180 = vmatprep.mubr.bf16.mxu0 0
    %181 = vmatmul.mubr.bf16.gmra.mrb[0].mxu0 %v142
    %v182 = vpop.f32.mrb[0].mxu0
    %v183 = vadd.f32 %v129, %v182
    %v184 = vpop.f32.mrb[0].mxu0
    %v185 = vpop.f32.mrb[0].mxu0
    %v186 = vpop.f32.mrb[0].mxu0
    %187 = vdwg.mxu0
    %v188 = vmax.f32 %v183, 0.0
    %v189 = vpack.c.bf16 %v188, %v188
    %v191 = vlaneseq
    %v192 = vshrl.u32 %v191, 7
    %v193 = vsub.s32 0, %v192
    %v194 = vrot.slane %v69, %v193
    %v206 = vunpack.c.l.b16 %v59
    %v207 = vunpack.c.l.b16 %v60
    %v208 = vunpack.c.l.b16 %v61
    %v209 = vunpack.c.l.b16 %v62
    %v210 = vunpack.c.l.b16 %v63
    %v211 = vunpack.c.l.b16 %v64
    %v212 = vunpack.c.l.b16 %v65
    %v213 = vunpack.c.l.b16 %v66
    %v214 = vunpack.c.l.b16 %v67
    %v215 = vunpack.c.l.b16 %v68
    %v216 = vpack.c.b16 %v207, %v206
    %v217 = vpack.c.b16 %v209, %v208
    %v218 = vpack.c.b16 %v211, %v210
    %v219 = vpack.c.b16 %v213, %v212
    %v220 = vpack.c.b16 %v215, %v214
    %vm226 = vcmask 654336
    %v228 = vsel %vm226, %v189, 0
    %230 = vmatprep.subr.bf16.mxu0 0
    %231 = vmatpush1.bf16.msra.mxu0 %v216
    %232 = vmatprep.subr.bf16.mxu0 0
    %233 = vmatpush1.bf16.msra.mxu0 %v217
    %234 = vmatprep.subr.bf16.mxu0 0
    %235 = vmatpush1.bf16.msra.mxu0 %v218
    %236 = vmatprep.subr.bf16.mxu0 0
    %237 = vmatpush1.bf16.msra.mxu0 %v219
    %238 = vmatprep.subr.bf16.mxu0 0
    %239 = vmatpush1.bf16.msra.mxu0 %v220
    %240 = vmatprep.subr.bf16.mxu0 0
    %241 = vmatpush1.bf16.msra.mxu0 0
    %242 = vmatprep.subr.bf16.mxu0 0
    %243 = vmatpush1.bf16.msra.mxu0 0
    %244 = vmatprep.subr.bf16.mxu0 0
    %245 = vmatpush1.bf16.msra.mxu0 0
    %246 = vmatprep.subr.bf16.mxu0 0
    %247 = vmatpush1.bf16.msra.mxu0 0
    %248 = vmatprep.subr.bf16.mxu0 0
    %249 = vmatpush1.bf16.msra.mxu0 0
    %250 = vmatprep.subr.bf16.mxu0 0
    %251 = vmatpush1.bf16.msra.mxu0 0
    %252 = vmatprep.subr.bf16.mxu0 0
    %253 = vmatpush1.bf16.msra.mxu0 0
    %254 = vmatprep.subr.bf16.mxu0 0
    %255 = vmatpush1.bf16.msra.mxu0 0
    %256 = vmatprep.subr.bf16.mxu0 0
    %257 = vmatpush1.bf16.msra.mxu0 0
    %258 = vmatprep.subr.bf16.mxu0 0
    %259 = vmatpush1.bf16.msra.mxu0 0
    %260 = vmatprep.subr.bf16.mxu0 0
    %261 = vmatpush1.bf16.msra.mxu0 0
    %262 = vmatprep.mubr.bf16.mxu0 0
    %263 = vmatmul.mubr.bf16.gmra.mrb[0].mxu0 %v228
    %v264 = vpop.f32.mrb[0].mxu0
    %v265 = vadd.f32 %v194, %v264
    %v266 = vpop.f32.mrb[0].mxu0
    %v267 = vpop.f32.mrb[0].mxu0
    %v268 = vpop.f32.mrb[0].mxu0
    %269 = vdwg.mxu0
    %v270 = vld [vmem:[%s7] sm:$0xf]
    %v271 = vld [vmem:[%s7 + $0x4] sm:$0xf]
    %v272 = vld [vmem:[%s7 + $0x8] sm:$0xf]
    %v273 = vld [vmem:[%s7 + $0xc] sm:$0xf]
    %v274 = vld [vmem:[%s7 + $0x10] sm:$0xf]
    %v275 = vld [vmem:[%s7 + $0x14] sm:$0xf]
    %v276 = vld [vmem:[%s7 + $0x18] sm:$0xf]
    %v277 = vld [vmem:[%s7 + $0x1c] sm:$0xf]
    %v278 = vld [vmem:[%s7 + $0x20] sm:$0xf]
    %v279 = vld [vmem:[%s7 + $0x24] sm:$0xf]
    %v280 = vld [vmem:[%s8] sm:$0x1]
    %v281 = vld [vmem:[%s9] sm:$0xf]
    %v282 = vld [vmem:[%s9 + $0x4] sm:$0xf]
    %v283 = vld [vmem:[%s9 + $0x8] sm:$0xf]
    %v284 = vld [vmem:[%s9 + $0xc] sm:$0xf]
    %v285 = vld [vmem:[%s9 + $0x10] sm:$0xf]
    %v286 = vld [vmem:[%s9 + $0x14] sm:$0xf]
    %v287 = vld [vmem:[%s9 + $0x18] sm:$0xf]
    %v288 = vld [vmem:[%s9 + $0x1c] sm:$0xf]
    %v289 = vld [vmem:[%s9 + $0x20] sm:$0xf]
    %v290 = vld [vmem:[%s9 + $0x24] sm:$0xf]
    %v291 = vld [vmem:[%s10] sm:$0x1]
    %s292 = sld [smem:[#allocation2 + $0x1]]
    %v293 = vpack.c.bf16 %v265, %v265
    %v295 = vsel %vm76, %v293, 0
    %297 = vmatprep.subr.bf16.mxu0 0
    %298 = vmatpush1.bf16.msra.mxu0 %v295
    %299 = vmatprep.subr.bf16.mxu0 0
    %300 = vmatpush1.bf16.msra.mxu0 0
    %301 = vmatprep.subr.bf16.mxu0 0
    %302 = vmatpush1.bf16.msra.mxu0 0
    %303 = vmatprep.subr.bf16.mxu0 0
    %304 = vmatpush1.bf16.msra.mxu0 0
    %305 = vmatprep.subr.bf16.mxu0 0
    %306 = vmatpush1.bf16.msra.mxu0 0
    %307 = vmatprep.subr.bf16.mxu0 0
    %308 = vmatpush1.bf16.msra.mxu0 0
    %309 = vmatprep.subr.bf16.mxu0 0
    %310 = vmatpush1.bf16.msra.mxu0 0
    %311 = vmatprep.subr.bf16.mxu0 0
    %312 = vmatpush1.bf16.msra.mxu0 0
    %313 = vmatprep.subr.bf16.mxu0 0
    %314 = vmatpush1.bf16.msra.mxu0 0
    %315 = vmatprep.subr.bf16.mxu0 0
    %316 = vmatpush1.bf16.msra.mxu0 0
    %317 = vmatprep.subr.bf16.mxu0 0
    %318 = vmatpush1.bf16.msra.mxu0 0
    %319 = vmatprep.subr.bf16.mxu0 0
    %320 = vmatpush1.bf16.msra.mxu0 0
    %321 = vmatprep.subr.bf16.mxu0 0
    %322 = vmatpush1.bf16.msra.mxu0 0
    %323 = vmatprep.subr.bf16.mxu0 0
    %324 = vmatpush1.bf16.msra.mxu0 0
    %325 = vmatprep.subr.bf16.mxu0 0
    %326 = vmatpush1.bf16.msra.mxu0 0
    %327 = vmatprep.subr.bf16.mxu0 0
    %328 = vmatpush1.bf16.msra.mxu0 0
    %329 = vmatprep.mubr.bf16.mxu0 0
    %330 = vmatmul.mubr.bf16.gmra.mrb[0].mxu0 %v74
    %v331 = vpop.f32.mrb[0].mxu0
    %v332 = vadd.f32 0.0, %v331
    %v333 = vpop.f32.mrb[0].mxu0
    %v334 = vpop.f32.mrb[0].mxu0
    %v335 = vpop.f32.mrb[0].mxu0
    %336 = vdwg.mxu0
    %s337 = sadd.f32 %s292, 1.0
    %v338 = vstv %s337
    %v339 = vmul.f32 %v338, %v265
    %v340 = vadd.f32 %v339, %v332
    %v341 = vpack.c.bf16 %v340, %v340
    %v343 = vlaneseq
    %v344 = vshrl.u32 %v343, 7
    %v345 = vsub.s32 0, %v344
    %v346 = vrot.slane %v280, %v345
    %v358 = vunpack.c.l.b16 %v270
    %v359 = vunpack.c.l.b16 %v271
    %v360 = vunpack.c.l.b16 %v272
    %v361 = vunpack.c.l.b16 %v273
    %v362 = vunpack.c.l.b16 %v274
    %v363 = vunpack.c.l.b16 %v275
    %v364 = vunpack.c.l.b16 %v276
    %v365 = vunpack.c.l.b16 %v277
    %v366 = vunpack.c.l.b16 %v278
    %v367 = vunpack.c.l.b16 %v279
    %v368 = vpack.c.b16 %v359, %v358
    %v369 = vpack.c.b16 %v361, %v360
    %v370 = vpack.c.b16 %v363, %v362
    %v371 = vpack.c.b16 %v365, %v364
    %v372 = vpack.c.b16 %v367, %v366
    %v379 = vsel %vm226, %v341, 0
    %381 = vmatprep.subr.bf16.mxu0 0
    %382 = vmatpush1.bf16.msra.mxu0 %v368
    %383 = vmatprep.subr.bf16.mxu0 0
    %384 = vmatpush1.bf16.msra.mxu0 %v369
    %385 = vmatprep.subr.bf16.mxu0 0
    %386 = vmatpush1.bf16.msra.mxu0 %v370
    %387 = vmatprep.subr.bf16.mxu0 0
    %388 = vmatpush1.bf16.msra.mxu0 %v371
    %389 = vmatprep.subr.bf16.mxu0 0
    %390 = vmatpush1.bf16.msra.mxu0 %v372
    %391 = vmatprep.subr.bf16.mxu0 0
    %392 = vmatpush1.bf16.msra.mxu0 0
    %393 = vmatprep.subr.bf16.mxu0 0
    %394 = vmatpush1.bf16.msra.mxu0 0
    %395 = vmatprep.subr.bf16.mxu0 0
    %396 = vmatpush1.bf16.msra.mxu0 0
    %397 = vmatprep.subr.bf16.mxu0 0
    %398 = vmatpush1.bf16.msra.mxu0 0
    %399 = vmatprep.subr.bf16.mxu0 0
    %400 = vmatpush1.bf16.msra.mxu0 0
    %401 = vmatprep.subr.bf16.mxu0 0
    %402 = vmatpush1.bf16.msra.mxu0 0
    %403 = vmatprep.subr.bf16.mxu0 0
    %404 = vmatpush1.bf16.msra.mxu0 0
    %405 = vmatprep.subr.bf16.mxu0 0
    %406 = vmatpush1.bf16.msra.mxu0 0
    %407 = vmatprep.subr.bf16.mxu0 0
    %408 = vmatpush1.bf16.msra.mxu0 0
    %409 = vmatprep.subr.bf16.mxu0 0
    %410 = vmatpush1.bf16.msra.mxu0 0
    %411 = vmatprep.subr.bf16.mxu0 0
    %412 = vmatpush1.bf16.msra.mxu0 0
    %413 = vmatprep.mubr.bf16.mxu0 0
    %414 = vmatmul.mubr.bf16.gmra.mrb[0].mxu0 %v379
    %v415 = vpop.f32.mrb[0].mxu0
    %v416 = vadd.f32 %v346, %v415
    %v417 = vpop.f32.mrb[0].mxu0
    %v418 = vpop.f32.mrb[0].mxu0
    %v419 = vpop.f32.mrb[0].mxu0
    %420 = vdwg.mxu0
    %v421 = vmax.f32 %v416, 0.0
    %v422 = vpack.c.bf16 %v421, %v421
    %v424 = vlaneseq
    %v425 = vshrl.u32 %v424, 7
    %v426 = vsub.s32 0, %v425
    %v427 = vrot.slane %v291, %v426
    %v439 = vunpack.c.l.b16 %v281
    %v440 = vunpack.c.l.b16 %v282
    %v441 = vunpack.c.l.b16 %v283
    %v442 = vunpack.c.l.b16 %v284
    %v443 = vunpack.c.l.b16 %v285
    %v444 = vunpack.c.l.b16 %v286
    %v445 = vunpack.c.l.b16 %v287
    %v446 = vunpack.c.l.b16 %v288
    %v447 = vunpack.c.l.b16 %v289
    %v448 = vunpack.c.l.b16 %v290
    %v449 = vpack.c.b16 %v440, %v439
    %v450 = vpack.c.b16 %v442, %v441
    %v451 = vpack.c.b16 %v444, %v443
    %v452 = vpack.c.b16 %v446, %v445
    %v453 = vpack.c.b16 %v448, %v447
    %v460 = vsel %vm226, %v422, 0
    %462 = vmatprep.subr.bf16.mxu0 0
    %463 = vmatpush1.bf16.msra.mxu0 %v449
    %464 = vmatprep.subr.bf16.mxu0 0
    %465 = vmatpush1.bf16.msra.mxu0 %v450
    %466 = vmatprep.subr.bf16.mxu0 0
    %467 = vmatpush1.bf16.msra.mxu0 %v451
    %468 = vmatprep.subr.bf16.mxu0 0
    %469 = vmatpush1.bf16.msra.mxu0 %v452
    %470 = vmatprep.subr.bf16.mxu0 0
    %471 = vmatpush1.bf16.msra.mxu0 %v453
    %472 = vmatprep.subr.bf16.mxu0 0
    %473 = vmatpush1.bf16.msra.mxu0 0
    %474 = vmatprep.subr.bf16.mxu0 0
    %475 = vmatpush1.bf16.msra.mxu0 0
    %476 = vmatprep.subr.bf16.mxu0 0
    %477 = vmatpush1.bf16.msra.mxu0 0
    %478 = vmatprep.subr.bf16.mxu0 0
    %479 = vmatpush1.bf16.msra.mxu0 0
    %480 = vmatprep.subr.bf16.mxu0 0
    %481 = vmatpush1.bf16.msra.mxu0 0
    %482 = vmatprep.subr.bf16.mxu0 0
    %483 = vmatpush1.bf16.msra.mxu0 0
    %484 = vmatprep.subr.bf16.mxu0 0
    %485 = vmatpush1.bf16.msra.mxu0 0
    %486 = vmatprep.subr.bf16.mxu0 0
    %487 = vmatpush1.bf16.msra.mxu0 0
    %488 = vmatprep.subr.bf16.mxu0 0
    %489 = vmatpush1.bf16.msra.mxu0 0
    %490 = vmatprep.subr.bf16.mxu0 0
    %491 = vmatpush1.bf16.msra.mxu0 0
    %492 = vmatprep.subr.bf16.mxu0 0
    %493 = vmatpush1.bf16.msra.mxu0 0
    %494 = vmatprep.mubr.bf16.mxu0 0
    %495 = vmatmul.mubr.bf16.gmra.mrb[0].mxu0 %v460
    %v496 = vpop.f32.mrb[0].mxu0
    %v497 = vadd.f32 %v427, %v496
    %v498 = vpop.f32.mrb[0].mxu0
    %v499 = vpop.f32.mrb[0].mxu0
    %v500 = vpop.f32.mrb[0].mxu0
    %501 = vdwg.mxu0
    %502 = vst.msk [vmem:[#allocation5] sm:$0xff] %vm72, %v497
    // Predicated region
    $region50: #{gine_phi_forward.1} parent=1 // pred_check
      _
    $region51: #{gine_phi_forward.1} parent=1 // pred_check_branch
      %504 = sbr.rel (0) target = $region53
    $region52: #{gine_phi_forward.1} parent=1 // pred_region
      %s506 = ssub.s32 128, 128
      %507 = vsyncadd [#allocation3], %s506
      %s509 = sshll.u32 [#allocation5], 4
      %s510 = int_to_ptr.vmem [resolvable:$true] %s509
      %512 = dma.vmem_to_hbm [thread:$0]  %s510, 128, %s11, [#allocation3]
    $region53: #{gine_phi_forward.1} parent=1 // pred_fallthru
      _
    // Predicated region
    $region54: #{gine_phi_forward.1} parent=1 // pred_check
      _
    $region55: #{gine_phi_forward.1} parent=1 // pred_check_branch
      %514 = sbr.rel (0) target = $region57
    $region56: #{gine_phi_forward.1} parent=1 // pred_region
      %515 = dma.done [#allocation3], 128
    $region57: #{gine_phi_forward.1} parent=1 // pred_fallthru
      _
    %516 = vsyncpa [#allocation3], 1
    %517 = vsyncpa [#allocation4], 1

</llo_original>
